<compile_context>
chip_gen: v6e
topology: v6e:2x2x1
jax: 0.10.0
libtpu: 0.0.40
codegen_flags: <defaults>
</compile_context>

<pallas_src>
import functools

import jax
import jax.numpy as jnp
from jax.experimental import pallas as pl
from jax.experimental.pallas import tpu as pltpu

_LANE = 128
_SUBLANE = 8


def _wce_kernel(x_ref, t_ref, w_ref, nll_ref, *, class_axis):
    """Per-sample weighted NLL for one batch tile.

    class_axis == 0 : x (C, TILE_N), t (1, TILE_N), w (C, 1), out (1, TILE_N)
    class_axis == 1 : x (TILE_N, C), t (TILE_N, 1), w (1, C), out (TILE_N, 1)
    """
    # Native-dtype DMA, f32 compute (required on v5e; free filler elsewhere).
    x = x_ref[...].astype(jnp.float32)
    t = t_ref[...]                       # int32
    w = w_ref[...].astype(jnp.float32)

    # Stable log-softmax over the class axis, fused with the one-hot gather:
    #   logp_picked = x_picked - m - lse   (no (TILE, C) log_probs tensor is built)
    m = jnp.max(x, axis=class_axis, keepdims=True)
    lse = jnp.log(jnp.sum(jnp.exp(x - m), axis=class_axis, keepdims=True))

    cls = jax.lax.broadcasted_iota(jnp.int32, x.shape, class_axis)
    onehot = (cls == t).astype(jnp.float32)
    picked_x = jnp.sum(x * onehot, axis=class_axis, keepdims=True)
    picked_w = jnp.sum(w * onehot, axis=class_axis, keepdims=True)

    # per-sample weighted NLL:  -w * logp = w * (m + lse - x_picked)
    nll_ref[...] = picked_w * (m + lse - picked_x)


def _pick_tile_n(n, bytes_per_sample, *, align, target_bytes=2 * 1024 * 1024, cap=4096):
    """Largest aligned batch tile whose logits slab stays around `target_bytes`."""
    t = min(cap, max(align, target_bytes // max(1, bytes_per_sample)))
    t = max(align, (t // align) * align)
    return n if n <= t else t


@functools.partial(jax.jit, static_argnames=("tile_n", "small_c_threshold"))
def weighted_cross_entropy_loss(inputs, targets, weights, *, tile_n=None,
                                small_c_threshold=64):
    """inputs: (N, C) logits (any float dtype); targets: (N,) int; weights: (C,) -> scalar f32."""
    n, c = inputs.shape
    targets = targets.astype(jnp.int32)
    weights = weights.astype(jnp.float32)
    itemsize = jnp.dtype(inputs.dtype).itemsize

    if c <= small_c_threshold:
        # Lane-dense layout for small C: batch on the 128-wide lane axis so each vreg
        # carries 128 samples instead of only C useful classes.
        class_axis = 0
        if tile_n is None:
            tile_n = _pick_tile_n(n, c * itemsize, align=_LANE)
        x = inputs.T                      # (C, N) — native dtype on the wire
        t = targets.reshape(1, n)
        w = weights.reshape(c, 1)
        x_spec = pl.BlockSpec((c, tile_n), lambda i: (0, i))
        t_spec = pl.BlockSpec((1, tile_n), lambda i: (0, i))
        w_spec = pl.BlockSpec((c, 1), lambda i: (0, 0))        # resident, one DMA
        out_shape = jax.ShapeDtypeStruct((1, n), jnp.float32)  # lane-dense writes
        out_spec = pl.BlockSpec((1, tile_n), lambda i: (0, i))
    else:
        # Natural (N, C) layout: classes fill the lane axis.
        class_axis = 1
        if tile_n is None:
            tile_n = _pick_tile_n(n, c * itemsize, align=_SUBLANE)
        x = inputs                        # (N, C)
        t = targets.reshape(n, 1)
        w = weights.reshape(1, c)
        x_spec = pl.BlockSpec((tile_n, c), lambda i: (i, 0))
        t_spec = pl.BlockSpec((tile_n, 1), lambda i: (i, 0))
        w_spec = pl.BlockSpec((1, c), lambda i: (0, 0))        # resident, one DMA
        out_shape = jax.ShapeDtypeStruct((n, 1), jnp.float32)
        out_spec = pl.BlockSpec((tile_n, 1), lambda i: (i, 0))

    num_tiles = pl.cdiv(n, tile_n)
    kernel = functools.partial(_wce_kernel, class_axis=class_axis)

    per_sample = pl.pallas_call(
        kernel,
        out_shape=out_shape,
        grid=(num_tiles,),
        in_specs=[x_spec, t_spec, w_spec],
        out_specs=out_spec,
        compiler_params=pltpu.CompilerParams(
            dimension_semantics=("parallel",)),       # v7x: 2 TCs split the batch
    )(x, t, w)

    # Final (tiny) reduction + the module's mean-over-len(targets).
    return jnp.sum(per_sample) / n


def _reference(inputs, targets, weights):
    x = inputs.astype(jnp.float32)
    w = weights.astype(jnp.float32)
    n = x.shape[0]
    logp = jax.nn.log_softmax(x, axis=1)
    return -jnp.sum(w[targets] * logp[jnp.arange(n), targets]) / n


if __name__ == "__main__":
    key = jax.random.PRNGKey(0)
    k1, k2, k3, k4, k5, k6 = jax.random.split(key, 6)

    # Case 1: the module's own configuration (weights = ones(10) -> 10 classes).
    n1, c1 = 8, 10
    x1 = jax.random.normal(k1, (n1, c1), dtype=jnp.float32)
    t1 = jax.random.randint(k2, (n1,), 0, c1, dtype=jnp.int32)
    w1 = jnp.ones((c1,), dtype=jnp.float32)
    loss1 = weighted_cross_entropy_loss(x1, t1, w1)
    ref1 = _reference(x1, t1, w1)

    # Case 2: small-C lane-dense path with a multi-tile grid and a clipped partial tile.
    n2, c2 = 300, 10
    x2 = jax.random.normal(k3, (n2, c2), dtype=jnp.float32)
    t2 = jax.random.randint(k4, (n2,), 0, c2, dtype=jnp.int32)
    w2 = jax.random.uniform(k5, (c2,), dtype=jnp.float32) + 0.5
    loss2 = weighted_cross_entropy_loss(x2, t2, w2, tile_n=128)
    ref2 = _reference(x2, t2, w2)

    # Case 3: large-C path, bf16 logits on the wire, gridded + clipped last tile.
    n3, c3 = 300, 256
    x3 = jax.random.normal(k6, (n3, c3), dtype=jnp.float32).astype(jnp.bfloat16)
    t3 = jax.random.randint(k2, (n3,), 0, c3, dtype=jnp.int32)
    w3 = jnp.ones((c3,), dtype=jnp.float32)
    loss3 = weighted_cross_entropy_loss(x3, t3, w3, tile_n=128)
    ref3 = _reference(x3, t3, w3)

    jax.block_until_ready((loss1, loss2, loss3))

    for got, want in ((loss1, ref1), (loss2, ref2), (loss3, ref3)):
        assert jnp.allclose(got, want, rtol=1e-4, atol=1e-5), (got, want)

    print("KERNEL_OK")
</pallas_src>

<mosaic_0001>
module attributes {stable_mosaic.version = 11 : i64} {
  func.func @_wce_kernel(%arg0: i32, %arg1: memref<10x8xf32, #tpu.memory_space<vmem>>, %arg2: memref<1x8xi32, #tpu.memory_space<vmem>>, %arg3: memref<10x1xf32, #tpu.memory_space<vmem>>, %arg4: memref<1x8xf32, #tpu.memory_space<vmem>>) attributes {dimension_semantics = [#tpu.dimension_semantics<parallel>], iteration_bounds = array<i64: 1>, scalar_prefetch = 0 : i64, scratch_operands = 0 : i64, tpu.core_type = #tpu.core_type<tc>, window_params = [{transform_indices = @transform_0, window_bounds = array<i64: 10, 8>}, {transform_indices = @transform_1, window_bounds = array<i64: 1, 8>}, {pipeline_mode = #tpu.pipeline_mode<synchronous>, transform_indices = @transform_2, window_bounds = array<i64: 10, 1>}, {transform_indices = @transform_3, window_bounds = array<i64: 1, 8>}]} {
    %c0 = arith.constant 0 : index
    %c0_0 = arith.constant 0 : index
    %0 = vector.load %arg1[%c0, %c0_0] : memref<10x8xf32, #tpu.memory_space<vmem>>, vector<10x8xf32>
    %c0_1 = arith.constant 0 : index
    %c0_2 = arith.constant 0 : index
    %1 = vector.load %arg2[%c0_1, %c0_2] : memref<1x8xi32, #tpu.memory_space<vmem>>, vector<1x8xi32>
    %c0_3 = arith.constant 0 : index
    %c0_4 = arith.constant 0 : index
    %2 = vector.load %arg3[%c0_3, %c0_4] : memref<10x1xf32, #tpu.memory_space<vmem>>, vector<10x1xf32>
    %cst = arith.constant dense<0xFF800000> : vector<8xf32>
    %3 = vector.multi_reduction <maximumf>, %0, %cst [0] : vector<10x8xf32> to vector<8xf32>
    %4 = vector.shape_cast %3 : vector<8xf32> to vector<1x8xf32>
    %5 = vector.broadcast %4 : vector<1x8xf32> to vector<10x8xf32>
    %6 = arith.subf %0, %5 : vector<10x8xf32>
    %7 = math.exp %6 : vector<10x8xf32>
    %cst_5 = arith.constant dense<0.000000e+00> : vector<8xf32>
    %8 = vector.multi_reduction <add>, %7, %cst_5 [0] : vector<10x8xf32> to vector<8xf32>
    %9 = vector.shape_cast %8 : vector<8xf32> to vector<1x8xf32>
    %10 = math.log %9 : vector<1x8xf32>
    %11 = tpu.iota {dimensions = array<i32: 0>} : vector<10x8xi32>
    %12 = vector.broadcast %1 : vector<1x8xi32> to vector<10x8xi32>
    %13 = arith.cmpi eq, %11, %12 : vector<10x8xi32>
    %14 = arith.extui %13 : vector<10x8xi1> to vector<10x8xi32>
    %15 = arith.sitofp %14 : vector<10x8xi32> to vector<10x8xf32>
    %16 = arith.mulf %0, %15 : vector<10x8xf32>
    %cst_6 = arith.constant dense<0.000000e+00> : vector<8xf32>
    %17 = vector.multi_reduction <add>, %16, %cst_6 [0] : vector<10x8xf32> to vector<8xf32>
    %18 = vector.shape_cast %17 : vector<8xf32> to vector<1x8xf32>
    %19 = vector.broadcast %2 : vector<10x1xf32> to vector<10x8xf32>
    %20 = arith.mulf %19, %15 : vector<10x8xf32>
    %cst_7 = arith.constant dense<0.000000e+00> : vector<8xf32>
    %21 = vector.multi_reduction <add>, %20, %cst_7 [0] : vector<10x8xf32> to vector<8xf32>
    %22 = vector.shape_cast %21 : vector<8xf32> to vector<1x8xf32>
    %23 = arith.addf %4, %10 : vector<1x8xf32>
    %24 = arith.subf %23, %18 : vector<1x8xf32>
    %25 = arith.mulf %22, %24 : vector<1x8xf32>
    %c0_8 = arith.constant 0 : index
    %c0_9 = arith.constant 0 : index
    %26 = vector.load %arg4[%c0_8, %c0_9] : memref<1x8xf32, #tpu.memory_space<vmem>>, vector<1x8xf32>
    tpu.vector_store %arg4[%c0_8, %c0_9], %25 {strides = array<i32>} : memref<1x8xf32, #tpu.memory_space<vmem>>, vector<1x8xf32>,
    return
  }
  func.func @transform_0(%arg0: i32) -> (i32, i32) {
    %c0_i32 = arith.constant 0 : i32
    %c0_i32_0 = arith.constant 0 : i32
    return %c0_i32, %arg0 : i32, i32
  }
  func.func @transform_1(%arg0: i32) -> (i32, i32) {
    %c0_i32 = arith.constant 0 : i32
    %c0_i32_0 = arith.constant 0 : i32
    return %c0_i32, %arg0 : i32, i32
  }
  func.func @transform_2(%arg0: i32) -> (i32, i32) {
    %c0_i32 = arith.constant 0 : i32
    %c0_i32_0 = arith.constant 0 : i32
    %c0_i32_1 = arith.constant 0 : i32
    return %c0_i32, %c0_i32_0 : i32, i32
  }
  func.func @transform_3(%arg0: i32) -> (i32, i32) {
    %c0_i32 = arith.constant 0 : i32
    %c0_i32_0 = arith.constant 0 : i32
    return %c0_i32, %arg0 : i32, i32
  }
}

</mosaic_0001>

<llo_original>
// kernel: weighted_cross_entropy_loss.1
$region0: #{weighted_cross_entropy_loss.1}
  #allocation0 [shape = 'u32[]', space=smem, size = 0x4, offset = 0x4, fixed_abs, tag = 'smem constant byte address 0x4 - core index']
  #allocation1 [shape = 'u32[144,128]{1,0:T(1,128)}', space=vmem, size = 0x12000, scoped, tag = 'internal scratch']
  %s0 = inlined_call_operand.vmem [shape: f32[10,8], index: 0, kind: input, shape index: {}]
  %s1 = inlined_call_operand.vmem [shape: s32[1,8], index: 1, kind: input, shape index: {}]
  %s2 = inlined_call_operand.vmem [shape: f32[10,1], index: 2, kind: input, shape index: {}]
  %s3 = inlined_call_operand.vmem [shape: f32[1,8], index: 3, kind: output, shape index: {}]
  %s4 = sld [smem:[#allocation0]]
  $region22: #{weighted_cross_entropy_loss.1} parent=0
    _
  %s6 = ssub.s32 1, %s4
  %s7 = scalar_select 0, %s6, %s4
  // Predicated region
  $region2: #{weighted_cross_entropy_loss.1} parent=0 // pred_check
    _
  $region3: #{weighted_cross_entropy_loss.1} parent=0 // pred_check_branch
    %9 = sbr.rel (0) target = $region5
  $region4: #{weighted_cross_entropy_loss.1} parent=0 // pred_region
    _
  $region5: #{weighted_cross_entropy_loss.1} parent=0 // pred_fallthru
    _
  // Predicated region
  $region6: #{weighted_cross_entropy_loss.1} parent=0 // pred_check
    _
  $region7: #{weighted_cross_entropy_loss.1} parent=0 // pred_check_branch
    %11 = sbr.rel (0) target = $region9
  $region8: #{weighted_cross_entropy_loss.1} parent=0 // pred_region
    _
  $region9: #{weighted_cross_entropy_loss.1} parent=0 // pred_fallthru
    _
  // Predicated region
  $region10: #{weighted_cross_entropy_loss.1} parent=0 // pred_check
    _
  $region11: #{weighted_cross_entropy_loss.1} parent=0 // pred_check_branch
    %13 = sbr.rel (0) target = $region13
  $region12: #{weighted_cross_entropy_loss.1} parent=0 // pred_region
    _
  $region13: #{weighted_cross_entropy_loss.1} parent=0 // pred_fallthru
    _
  %v14 = vld [vmem:[%s0] sm:$0xff]
  %v15 = vld [vmem:[%s0 + $0x8] sm:$0x3]
  %v16 = vld [vmem:[%s1] sm:$0x1]
  %v17 = vld [vmem:[%s2] sm:$0xff]
  %v18 = vld [vmem:[%s2 + $0x8] sm:$0x3]
  %vm19 = vcmask 64512
  %v20 = vsel %vm19, %v14, -inf
  %vm21 = vcmask 58368
  %v22 = vsel %vm21, %v15, -inf
  %v23 = vmax.f32 %v20, %v22
  %v24 = vrot.slane %v23, 4
  %v25 = vmax.f32 %v23, %v24
  %v26 = vrot.slane %v25, 2
  %v27 = vmax.f32 %v25, %v26
  %v28 = vrot.slane %v27, 1
  %v29 = vmax.f32 %v27, %v28
  %v30 = vsub.f32 %v14, %v29
  %v31 = vsub.f32 %v15, %v29
  %v32 = vmul.f32 %v30, 1.442695
  %v33 = vpow.pop %v32
  %v34 = vmul.f32 %v31, 1.442695
  %v35 = vpow.pop %v34
  %v36 = vsel %vm19, %v33, 0.0
  %v37 = vsel %vm21, %v35, 0.0
  %v38 = vadd.f32 %v36, %v37
  %v39 = vrot.slane %v38, 4
  %v40 = vadd.f32 %v38, %v39
  %v41 = vrot.slane %v40, 2
  %v42 = vadd.f32 %v40, %v41
  %v43 = vrot.slane %v42, 1
  %v44 = vadd.f32 %v42, %v43
  %v45 = vlog2.pop %v44
  %v46 = vmul.f32 %v45, 0.6931472
  %v47 = vlaneseq
  %v48 = vshrl.u32 %v47, 7
  %v49 = vadd.s32 %v48, 8
  %v50 = vlaneseq
  %v51 = vshrl.u32 %v50, 7
  %v52 = vsub.s32 0, %v51
  %v53 = vrot.slane %v16, %v52
  %vm54 = vcmp.eq.s32.totalorder %v48, %v53
  %vm55 = vcmp.eq.s32.totalorder %v49, %v53
  %v56 = vsel %vm54, 1, 0
  %v57 = vsel %vm55, 1, 0
  %v58 = vcvt.s32.f32 %v56
  %v59 = vcvt.s32.f32 %v57
  %v60 = vmul.f32 %v14, %v58
  %v61 = vmul.f32 %v15, %v59
  %v62 = vsel %vm19, %v60, 0.0
  %v63 = vsel %vm21, %v61, 0.0
  %v64 = vadd.f32 %v62, %v63
  %v65 = vrot.slane %v64, 4
  %v66 = vadd.f32 %v64, %v65
  %v67 = vrot.slane %v66, 2
  %v68 = vadd.f32 %v66, %v67
  %v69 = vrot.slane %v68, 1
  %v70 = vadd.f32 %v68, %v69
  %72 = vset.pattern.permute.xlu0 0
  %73 = vperm.xlu0 %72, %v17
  %v74 = vpop.permute.xlu0 %73
  %77 = vset.pattern.permute.xlu0 0
  %78 = vperm.xlu0 %77, %v18
  %v79 = vpop.permute.xlu0 %78
  %v81 = vmul.f32 %v74, %v58
  %v82 = vmul.f32 %v79, %v59
  %v83 = vsel %vm19, %v81, 0.0
  %v84 = vsel %vm21, %v82, 0.0
  %v85 = vadd.f32 %v83, %v84
  %v86 = vrot.slane %v85, 4
  %v87 = vadd.f32 %v85, %v86
  %v88 = vrot.slane %v87, 2
  %v89 = vadd.f32 %v87, %v88
  %v90 = vrot.slane %v89, 1
  %v91 = vadd.f32 %v89, %v90
  %v92 = vadd.f32 %v29, %v46
  %v93 = vsub.f32 %v92, %v70
  %v94 = vmul.f32 %v91, %v93
  %vm95 = vcmask 57344
  %96 = vst.msk [vmem:[%s3] sm:$0x1] %vm95, %v94
  // Predicated region
  $region14: #{weighted_cross_entropy_loss.1} parent=0 // pred_check
    _
  $region15: #{weighted_cross_entropy_loss.1} parent=0 // pred_check_branch
    %98 = sbr.rel (0) target = $region17
  $region16: #{weighted_cross_entropy_loss.1} parent=0 // pred_region
    _
  $region17: #{weighted_cross_entropy_loss.1} parent=0 // pred_fallthru
    _
  // Predicated region
  $region18: #{weighted_cross_entropy_loss.1} parent=0 // pred_check
    _
  $region19: #{weighted_cross_entropy_loss.1} parent=0 // pred_check_branch
    %100 = sbr.rel (0) target = $region21
  $region20: #{weighted_cross_entropy_loss.1} parent=0 // pred_region
    _
  $region21: #{weighted_cross_entropy_loss.1} parent=0 // pred_fallthru
    _

</llo_original>
